<compile_context>
chip_gen: v7x
topology: tpu7x:2x2x1
jax: 0.10.0
libtpu: 0.0.40
codegen_flags: <defaults>
</compile_context>

<pallas_src>
import functools

import jax
import jax.numpy as jnp
from jax import lax
from jax.experimental import pallas as pl
from jax.experimental.pallas import tpu as pltpu

HIDDEN = 512
LAYER_NUM = 17
MAX_BATCH_TILE = 512   # rows per grid step upper bound (sweep range 256-512)
ROW_GRANULE = 16       # bf16 sublane-packing granularity
LANE = 128


def _head_bounds(head_widths):
    """Static (start, end) column bounds per head and the total output width."""
    bounds, start = [], 0
    for w in head_widths:
        bounds.append((start, start + int(w)))
        start += int(w)
    return tuple(bounds), start


def _choose_batch_tiling(batch, *, max_tile=MAX_BATCH_TILE,
                         granule=ROW_GRANULE, target_steps=2):
    """Pick (batch_tile, padded_batch).

    * tiny batches: round up to the 16-row granule only (no 128-row padding).
    * mid/large batches: aim for >= target_steps grid steps (v7x shards the
      'parallel' axis over its 2 TensorCores) while capping the tile at
      max_tile so per-grid-step overhead is amortized and VMEM stays bounded.
    """
    b_rounded = -(-batch // granule) * granule
    tile_for_steps = -(-b_rounded // target_steps)
    tile_for_steps = -(-tile_for_steps // granule) * granule
    tile = max(granule, min(max_tile, tile_for_steps))
    b_pad = -(-batch // tile) * tile
    return tile, b_pad


def _vmem_limit_bytes(tile, in_dim_pad, hidden, half, total):
    """Conservative VMEM budget for this tiling (consts single-buffered,
    streamed x/out double-buffered, plus f32 intermediates)."""
    bf, f32 = 2, 4
    weights = (in_dim_pad * hidden + hidden * half + half * total) * bf \
        + (hidden + half + total) * f32
    streamed = 2 * tile * in_dim_pad * bf + 2 * tile * total * f32
    intermediates = tile * (hidden + half) * f32 + 4 * tile * total * f32
    budget = weights + streamed + intermediates
    # 2x headroom, floor 16 MiB, stay well under v7x's 64 MiB physical VMEM.
    return int(max(16 << 20, min(48 << 20, 2 * budget)))


def _build_actor_kernel(head_bounds):
    """Pallas kernel body; head boundaries baked in statically."""

    def kernel(x_ref, w1_ref, b1_ref, w2_ref, b2_ref, wh_ref, bh_ref, out_ref):
        # layer_1 + ReLU  (bf16 operands, f32 MXU accumulation)
        h1 = jnp.dot(x_ref[...], w1_ref[...], preferred_element_type=jnp.float32)
        h1 = jnp.maximum(h1 + b1_ref[...], 0.0)

        # layer_2 + ReLU
        h2 = jnp.dot(h1.astype(jnp.bfloat16), w2_ref[...],
                     preferred_element_type=jnp.float32)
        h2 = jnp.maximum(h2 + b2_ref[...], 0.0)

        # all 2*models_num heads fused into a single matmul
        logits = jnp.dot(h2.astype(jnp.bfloat16), wh_ref[...],
                         preferred_element_type=jnp.float32)
        logits = logits + bh_ref[...]

        # Segmented (per-head) softmax over the full row, no column slicing and
        # no extra operands: per-head lane masks are built from an in-kernel
        # iota against statically known head boundaries; each full-size mask is
        # built once and reused for both the max and the sum passes.
        col = lax.broadcasted_iota(jnp.int32, logits.shape, 1)
        fmin = jnp.float32(jnp.finfo(jnp.float32).min)

        segs = []
        max_per_col = jnp.full_like(logits, fmin)
        for start, end in head_bounds:                   # static unroll
            seg = (col >= start) & (col < end)           # (tile, total) mask
            segs.append(seg)
            m_h = jnp.max(jnp.where(seg, logits, fmin), axis=-1, keepdims=True)
            max_per_col = jnp.where(seg, m_h, max_per_col)

        p = jnp.exp(logits - max_per_col)

        denom = jnp.ones_like(p)
        for seg in segs:                                 # masked per-head row sums
            s_h = jnp.sum(jnp.where(seg, p, 0.0), axis=-1, keepdims=True)
            denom = jnp.where(seg, s_h, denom)

        # single lane-dense store of the concatenated per-head softmaxes
        out_ref[...] = p * pl.reciprocal(denom, approx=True)

    return kernel


def init_actor_params(key, input_dimension, models_num, gpus_num,
                      layer_num=LAYER_NUM, hidden=HIDDEN):
    """Deterministic synthetic parameter init (shapes match the PyTorch module).

    Weights are stored (in_features, out_features) in bf16 (f32 accumulation in
    the kernel); biases stay f32.
    """
    half = hidden // 2
    head_widths = []
    for _ in range(models_num):
        head_widths += [gpus_num, layer_num]
    total = sum(head_widths)

    keys = jax.random.split(key, 6)
    scale = 0.1
    w1 = (scale * jax.random.normal(keys[0], (input_dimension, hidden),
                                    jnp.float32)).astype(jnp.bfloat16)
    b1 = scale * jax.random.normal(keys[1], (1, hidden), jnp.float32)
    w2 = (scale * jax.random.normal(keys[2], (hidden, half),
                                    jnp.float32)).astype(jnp.bfloat16)
    b2 = scale * jax.random.normal(keys[3], (1, half), jnp.float32)
    wh = (scale * jax.random.normal(keys[4], (half, total),
                                    jnp.float32)).astype(jnp.bfloat16)
    bh = scale * jax.random.normal(keys[5], (1, total), jnp.float32)
    return dict(w1=w1, b1=b1, w2=w2, b2=b2, wh=wh, bh=bh,
                head_widths=tuple(int(w) for w in head_widths))


@functools.partial(jax.jit, static_argnames=("head_widths",))
def actor_forward(x, w1, b1, w2, b2, wh, bh, *, head_widths):
    batch, in_dim = x.shape
    head_bounds, total = _head_bounds(head_widths)
    hidden = w1.shape[1]
    half = w2.shape[1]

    batch_tile, b_pad = _choose_batch_tiling(batch)
    in_dim_pad = -(-in_dim // LANE) * LANE

    # Lane-dense x tile (K padded to 128) and matching zero-padded w1 rows;
    # padded batch rows are sliced off after the call.
    x_pad = jnp.pad(x.astype(jnp.bfloat16),
                    ((0, b_pad - batch), (0, in_dim_pad - in_dim)))
    w1_pad = jnp.pad(w1, ((0, in_dim_pad - in_dim), (0, 0)))

    const = lambda i: (0, 0)     # weights/biases stay VMEM-resident across steps
    single = pl.Buffered(1)      # constant operands: no double-buffering

    kernel = _build_actor_kernel(head_bounds)
    out = pl.pallas_call(
        kernel,
        out_shape=jax.ShapeDtypeStruct((b_pad, total), jnp.float32),
        grid_spec=pltpu.PrefetchScalarGridSpec(
            num_scalar_prefetch=0,
            grid=(b_pad // batch_tile,),
            in_specs=[
                pl.BlockSpec((batch_tile, in_dim_pad), lambda i: (i, 0)),   # x
                pl.BlockSpec((in_dim_pad, hidden), const, pipeline_mode=single),  # w1
                pl.BlockSpec((1, hidden), const, pipeline_mode=single),           # b1
                pl.BlockSpec((hidden, half), const, pipeline_mode=single),        # w2
                pl.BlockSpec((1, half), const, pipeline_mode=single),             # b2
                pl.BlockSpec((half, total), const, pipeline_mode=single),         # wh
                pl.BlockSpec((1, total), const, pipeline_mode=single),            # bh
            ],
            out_specs=pl.BlockSpec((batch_tile, total), lambda i: (i, 0)),
        ),
        compiler_params=pltpu.CompilerParams(
            dimension_semantics=("parallel",),
            vmem_limit_bytes=_vmem_limit_bytes(batch_tile, in_dim_pad,
                                               hidden, half, total),
        ),
    )(x_pad, w1_pad, b1, w2, b2, wh, bh)
    return out[:batch]


def actor_reference(x, w1, b1, w2, b2, wh, bh, head_widths):
    """Pure-JAX reference mirroring the kernel's precision path (bf16 in / f32 acc)."""
    f32 = jnp.float32
    bf = lambda v: v.astype(jnp.bfloat16).astype(f32)
    h1 = jax.nn.relu(bf(x) @ w1.astype(f32) + b1)
    h2 = jax.nn.relu(bf(h1) @ w2.astype(f32) + b2)
    logits = bf(h2) @ wh.astype(f32) + bh
    outs, start = [], 0
    for w in head_widths:
        outs.append(jax.nn.softmax(logits[:, start:start + w], axis=-1))
        start += w
    return jnp.concatenate(outs, axis=1)


if __name__ == "__main__":
    # Small shapes consistent with the module.
    batch = 2
    input_dimension = 32
    models_num = 2
    gpus_num = 4

    key = jax.random.PRNGKey(0)
    pkey, xkey = jax.random.split(key)
    params = init_actor_params(pkey, input_dimension, models_num, gpus_num)

    x = jax.random.normal(xkey, (batch, input_dimension), jnp.float32)

    out = actor_forward(
        x, params["w1"], params["b1"], params["w2"], params["b2"],
        params["wh"], params["bh"], head_widths=params["head_widths"])
    out = jax.block_until_ready(out)

    ref = actor_reference(
        x, params["w1"], params["b1"], params["w2"], params["b2"],
        params["wh"], params["bh"], params["head_widths"])

    assert out.shape == (batch, models_num * (gpus_num + LAYER_NUM)), out.shape
    # bf16 inputs + f32 accumulation + approx reciprocal -> a few e-4 of slack;
    # per-head rows sum to 1 only up to ~2^-12 relative error (approx recip).
    assert jnp.allclose(out, ref, atol=5e-3, rtol=5e-3), "mismatch vs reference"

    # TODO(synk): self.output_layer exists in __init__ but is unused in
    # forward(); it is intentionally not implemented here.
    print("KERNEL_OK")
</pallas_src>

<mosaic_0001>
module attributes {stable_mosaic.version = 11 : i64} {
  func.func @kernel(%arg0: i32, %arg1: memref<16x128xbf16, #tpu.memory_space<vmem>>, %arg2: memref<128x512xbf16, #tpu.memory_space<vmem>>, %arg3: memref<1x512xf32, #tpu.memory_space<vmem>>, %arg4: memref<512x256xbf16, #tpu.memory_space<vmem>>, %arg5: memref<1x256xf32, #tpu.memory_space<vmem>>, %arg6: memref<256x42xbf16, #tpu.memory_space<vmem>>, %arg7: memref<1x42xf32, #tpu.memory_space<vmem>>, %arg8: memref<16x42xf32, #tpu.memory_space<vmem>>) attributes {dimension_semantics = [#tpu.dimension_semantics<parallel>], iteration_bounds = array<i64: 1>, scalar_prefetch = 0 : i64, scratch_operands = 0 : i64, tpu.core_type = #tpu.core_type<tc>, window_params = [{transform_indices = @transform_0, window_bounds = array<i64: 16, 128>}, {pipeline_mode = #tpu.pipeline_mode<synchronous>, transform_indices = @transform_1, window_bounds = array<i64: 128, 512>}, {pipeline_mode = #tpu.pipeline_mode<synchronous>, transform_indices = @transform_2, window_bounds = array<i64: 1, 512>}, {pipeline_mode = #tpu.pipeline_mode<synchronous>, transform_indices = @transform_3, window_bounds = array<i64: 512, 256>}, {pipeline_mode = #tpu.pipeline_mode<synchronous>, transform_indices = @transform_4, window_bounds = array<i64: 1, 256>}, {pipeline_mode = #tpu.pipeline_mode<synchronous>, transform_indices = @transform_5, window_bounds = array<i64: 256, 42>}, {pipeline_mode = #tpu.pipeline_mode<synchronous>, transform_indices = @transform_6, window_bounds = array<i64: 1, 42>}, {transform_indices = @transform_7, window_bounds = array<i64: 16, 42>}]} {
    %c0 = arith.constant 0 : index
    %c0_0 = arith.constant 0 : index
    %0 = vector.load %arg1[%c0, %c0_0] : memref<16x128xbf16, #tpu.memory_space<vmem>>, vector<16x128xbf16>
    %c0_1 = arith.constant 0 : index
    %c0_2 = arith.constant 0 : index
    %1 = vector.load %arg2[%c0_1, %c0_2] : memref<128x512xbf16, #tpu.memory_space<vmem>>, vector<128x512xbf16>
    %cst = arith.constant dense<0.000000e+00> : vector<16x512xf32>
    %2 = tpu.matmul %0, %1, %cst {dimension_numbers = #tpu.dot_dimension_numbers<[1], [0], [0], [1], [0, 0, 1, 1], [], []>} : vector<16x128xbf16>, vector<128x512xbf16>, vector<16x512xf32> -> vector<16x512xf32>
    %c0_3 = arith.constant 0 : index
    %c0_4 = arith.constant 0 : index
    %3 = vector.load %arg3[%c0_3, %c0_4] : memref<1x512xf32, #tpu.memory_space<vmem>>, vector<1x512xf32>
    %4 = vector.broadcast %3 : vector<1x512xf32> to vector<16x512xf32>
    %5 = arith.addf %2, %4 : vector<16x512xf32>
    %cst_5 = arith.constant 0.000000e+00 : f32
    %6 = vector.broadcast %cst_5 : f32 to vector<16x512xf32>
    %7 = arith.maximumf %5, %6 : vector<16x512xf32>
    %8 = arith.truncf %7 : vector<16x512xf32> to vector<16x512xbf16>
    %c0_6 = arith.constant 0 : index
    %c0_7 = arith.constant 0 : index
    %9 = vector.load %arg4[%c0_6, %c0_7] : memref<512x256xbf16, #tpu.memory_space<vmem>>, vector<512x256xbf16>
    %cst_8 = arith.constant dense<0.000000e+00> : vector<16x256xf32>
    %10 = tpu.matmul %8, %9, %cst_8 {dimension_numbers = #tpu.dot_dimension_numbers<[1], [0], [0], [1], [0, 0, 1, 1], [], []>} : vector<16x512xbf16>, vector<512x256xbf16>, vector<16x256xf32> -> vector<16x256xf32>
    %c0_9 = arith.constant 0 : index
    %c0_10 = arith.constant 0 : index
    %11 = vector.load %arg5[%c0_9, %c0_10] : memref<1x256xf32, #tpu.memory_space<vmem>>, vector<1x256xf32>
    %12 = vector.broadcast %11 : vector<1x256xf32> to vector<16x256xf32>
    %13 = arith.addf %10, %12 : vector<16x256xf32>
    %cst_11 = arith.constant 0.000000e+00 : f32
    %14 = vector.broadcast %cst_11 : f32 to vector<16x256xf32>
    %15 = arith.maximumf %13, %14 : vector<16x256xf32>
    %16 = arith.truncf %15 : vector<16x256xf32> to vector<16x256xbf16>
    %c0_12 = arith.constant 0 : index
    %c0_13 = arith.constant 0 : index
    %17 = vector.load %arg6[%c0_12, %c0_13] : memref<256x42xbf16, #tpu.memory_space<vmem>>, vector<256x42xbf16>
    %cst_14 = arith.constant dense<0.000000e+00> : vector<16x42xf32>
    %18 = tpu.matmul %16, %17, %cst_14 {dimension_numbers = #tpu.dot_dimension_numbers<[1], [0], [0], [1], [0, 0, 1, 1], [], []>} : vector<16x256xbf16>, vector<256x42xbf16>, vector<16x42xf32> -> vector<16x42xf32>
    %c0_15 = arith.constant 0 : index
    %c0_16 = arith.constant 0 : index
    %19 = vector.load %arg7[%c0_15, %c0_16] : memref<1x42xf32, #tpu.memory_space<vmem>>, vector<1x42xf32>
    %20 = vector.broadcast %19 : vector<1x42xf32> to vector<16x42xf32>
    %21 = arith.addf %18, %20 : vector<16x42xf32>
    %22 = tpu.iota {dimensions = array<i32: 1>} : vector<16x42xi32>
    %cst_17 = arith.constant -3.40282347E+38 : f32
    %23 = vector.broadcast %cst_17 : f32 to vector<16x42xf32>
    %c0_i32 = arith.constant 0 : i32
    %24 = vector.broadcast %c0_i32 : i32 to vector<16x42xi32>
    %25 = arith.cmpi sge, %22, %24 : vector<16x42xi32>
    %c4_i32 = arith.constant 4 : i32
    %26 = vector.broadcast %c4_i32 : i32 to vector<16x42xi32>
    %27 = arith.cmpi slt, %22, %26 : vector<16x42xi32>
    %28 = arith.andi %25, %27 : vector<16x42xi1>
    %cst_18 = arith.constant -3.40282347E+38 : f32
    %29 = vector.broadcast %cst_18 : f32 to vector<16x42xf32>
    %30 = arith.select %28, %21, %29 : vector<16x42xi1>, vector<16x42xf32>
    %cst_19 = arith.constant dense<0xFF800000> : vector<16xf32>
    %31 = vector.multi_reduction <maximumf>, %30, %cst_19 [1] : vector<16x42xf32> to vector<16xf32>
    %32 = vector.shape_cast %31 : vector<16xf32> to vector<16x1xf32>
    %33 = vector.shape_cast %32 : vector<16x1xf32> to vector<16x1xf32>
    %34 = vector.broadcast %33 : vector<16x1xf32> to vector<16x42xf32>
    %35 = arith.select %28, %34, %23 : vector<16x42xi1>, vector<16x42xf32>
    %c4_i32_20 = arith.constant 4 : i32
    %36 = vector.broadcast %c4_i32_20 : i32 to vector<16x42xi32>
    %37 = arith.cmpi sge, %22, %36 : vector<16x42xi32>
    %c21_i32 = arith.constant 21 : i32
    %38 = vector.broadcast %c21_i32 : i32 to vector<16x42xi32>
    %39 = arith.cmpi slt, %22, %38 : vector<16x42xi32>
    %40 = arith.andi %37, %39 : vector<16x42xi1>
    %cst_21 = arith.constant -3.40282347E+38 : f32
    %41 = vector.broadcast %cst_21 : f32 to vector<16x42xf32>
    %42 = arith.select %40, %21, %41 : vector<16x42xi1>, vector<16x42xf32>
    %cst_22 = arith.constant dense<0xFF800000> : vector<16xf32>
    %43 = vector.multi_reduction <maximumf>, %42, %cst_22 [1] : vector<16x42xf32> to vector<16xf32>
    %44 = vector.shape_cast %43 : vector<16xf32> to vector<16x1xf32>
    %45 = vector.shape_cast %44 : vector<16x1xf32> to vector<16x1xf32>
    %46 = vector.broadcast %45 : vector<16x1xf32> to vector<16x42xf32>
    %47 = arith.select %40, %46, %35 : vector<16x42xi1>, vector<16x42xf32>
    %c21_i32_23 = arith.constant 21 : i32
    %48 = vector.broadcast %c21_i32_23 : i32 to vector<16x42xi32>
    %49 = arith.cmpi sge, %22, %48 : vector<16x42xi32>
    %c25_i32 = arith.constant 25 : i32
    %50 = vector.broadcast %c25_i32 : i32 to vector<16x42xi32>
    %51 = arith.cmpi slt, %22, %50 : vector<16x42xi32>
    %52 = arith.andi %49, %51 : vector<16x42xi1>
    %cst_24 = arith.constant -3.40282347E+38 : f32
    %53 = vector.broadcast %cst_24 : f32 to vector<16x42xf32>
    %54 = arith.select %52, %21, %53 : vector<16x42xi1>, vector<16x42xf32>
    %cst_25 = arith.constant dense<0xFF800000> : vector<16xf32>
    %55 = vector.multi_reduction <maximumf>, %54, %cst_25 [1] : vector<16x42xf32> to vector<16xf32>
    %56 = vector.shape_cast %55 : vector<16xf32> to vector<16x1xf32>
    %57 = vector.shape_cast %56 : vector<16x1xf32> to vector<16x1xf32>
    %58 = vector.broadcast %57 : vector<16x1xf32> to vector<16x42xf32>
    %59 = arith.select %52, %58, %47 : vector<16x42xi1>, vector<16x42xf32>
    %c25_i32_26 = arith.constant 25 : i32
    %60 = vector.broadcast %c25_i32_26 : i32 to vector<16x42xi32>
    %61 = arith.cmpi sge, %22, %60 : vector<16x42xi32>
    %c42_i32 = arith.constant 42 : i32
    %62 = vector.broadcast %c42_i32 : i32 to vector<16x42xi32>
    %63 = arith.cmpi slt, %22, %62 : vector<16x42xi32>
    %64 = arith.andi %61, %63 : vector<16x42xi1>
    %cst_27 = arith.constant -3.40282347E+38 : f32
    %65 = vector.broadcast %cst_27 : f32 to vector<16x42xf32>
    %66 = arith.select %64, %21, %65 : vector<16x42xi1>, vector<16x42xf32>
    %cst_28 = arith.constant dense<0xFF800000> : vector<16xf32>
    %67 = vector.multi_reduction <maximumf>, %66, %cst_28 [1] : vector<16x42xf32> to vector<16xf32>
    %68 = vector.shape_cast %67 : vector<16xf32> to vector<16x1xf32>
    %69 = vector.shape_cast %68 : vector<16x1xf32> to vector<16x1xf32>
    %70 = vector.broadcast %69 : vector<16x1xf32> to vector<16x42xf32>
    %71 = arith.select %64, %70, %59 : vector<16x42xi1>, vector<16x42xf32>
    %72 = arith.subf %21, %71 : vector<16x42xf32>
    %73 = math.exp %72 : vector<16x42xf32>
    %cst_29 = arith.constant 1.000000e+00 : f32
    %74 = vector.broadcast %cst_29 : f32 to vector<16x42xf32>
    %cst_30 = arith.constant 0.000000e+00 : f32
    %75 = vector.broadcast %cst_30 : f32 to vector<16x42xf32>
    %76 = arith.select %28, %73, %75 : vector<16x42xi1>, vector<16x42xf32>
    %cst_31 = arith.constant dense<0.000000e+00> : vector<16xf32>
    %77 = vector.multi_reduction <add>, %76, %cst_31 [1] : vector<16x42xf32> to vector<16xf32>
    %78 = vector.shape_cast %77 : vector<16xf32> to vector<16x1xf32>
    %79 = vector.shape_cast %78 : vector<16x1xf32> to vector<16x1xf32>
    %80 = vector.broadcast %79 : vector<16x1xf32> to vector<16x42xf32>
    %81 = arith.select %28, %80, %74 : vector<16x42xi1>, vector<16x42xf32>
    %cst_32 = arith.constant 0.000000e+00 : f32
    %82 = vector.broadcast %cst_32 : f32 to vector<16x42xf32>
    %83 = arith.select %40, %73, %82 : vector<16x42xi1>, vector<16x42xf32>
    %cst_33 = arith.constant dense<0.000000e+00> : vector<16xf32>
    %84 = vector.multi_reduction <add>, %83, %cst_33 [1] : vector<16x42xf32> to vector<16xf32>
    %85 = vector.shape_cast %84 : vector<16xf32> to vector<16x1xf32>
    %86 = vector.shape_cast %85 : vector<16x1xf32> to vector<16x1xf32>
    %87 = vector.broadcast %86 : vector<16x1xf32> to vector<16x42xf32>
    %88 = arith.select %40, %87, %81 : vector<16x42xi1>, vector<16x42xf32>
    %cst_34 = arith.constant 0.000000e+00 : f32
    %89 = vector.broadcast %cst_34 : f32 to vector<16x42xf32>
    %90 = arith.select %52, %73, %89 : vector<16x42xi1>, vector<16x42xf32>
    %cst_35 = arith.constant dense<0.000000e+00> : vector<16xf32>
    %91 = vector.multi_reduction <add>, %90, %cst_35 [1] : vector<16x42xf32> to vector<16xf32>
    %92 = vector.shape_cast %91 : vector<16xf32> to vector<16x1xf32>
    %93 = vector.shape_cast %92 : vector<16x1xf32> to vector<16x1xf32>
    %94 = vector.broadcast %93 : vector<16x1xf32> to vector<16x42xf32>
    %95 = arith.select %52, %94, %88 : vector<16x42xi1>, vector<16x42xf32>
    %cst_36 = arith.constant 0.000000e+00 : f32
    %96 = vector.broadcast %cst_36 : f32 to vector<16x42xf32>
    %97 = arith.select %64, %73, %96 : vector<16x42xi1>, vector<16x42xf32>
    %cst_37 = arith.constant dense<0.000000e+00> : vector<16xf32>
    %98 = vector.multi_reduction <add>, %97, %cst_37 [1] : vector<16x42xf32> to vector<16xf32>
    %99 = vector.shape_cast %98 : vector<16xf32> to vector<16x1xf32>
    %100 = vector.shape_cast %99 : vector<16x1xf32> to vector<16x1xf32>
    %101 = vector.broadcast %100 : vector<16x1xf32> to vector<16x42xf32>
    %102 = arith.select %64, %101, %95 : vector<16x42xi1>, vector<16x42xf32>
    %103 = tpu.reciprocal %102 {approx = true} : vector<16x42xf32> -> vector<16x42xf32>
    %104 = arith.mulf %73, %103 : vector<16x42xf32>
    %c0_38 = arith.constant 0 : index
    %c0_39 = arith.constant 0 : index
    %105 = vector.load %arg8[%c0_38, %c0_39] : memref<16x42xf32, #tpu.memory_space<vmem>>, vector<16x42xf32>
    tpu.vector_store %arg8[%c0_38, %c0_39], %104 {strides = array<i32>} : memref<16x42xf32, #tpu.memory_space<vmem>>, vector<16x42xf32>,
    return
  }
  func.func @transform_0(%arg0: i32) -> (i32, i32) {
    %c0_i32 = arith.constant 0 : i32
    %c0_i32_0 = arith.constant 0 : i32
    return %arg0, %c0_i32 : i32, i32
  }
  func.func @transform_1(%arg0: i32) -> (i32, i32) {
    %c0_i32 = arith.constant 0 : i32
    %c0_i32_0 = arith.constant 0 : i32
    %c0_i32_1 = arith.constant 0 : i32
    return %c0_i32, %c0_i32_0 : i32, i32
  }
  func.func @transform_2(%arg0: i32) -> (i32, i32) {
    %c0_i32 = arith.constant 0 : i32
    %c0_i32_0 = arith.constant 0 : i32
    %c0_i32_1 = arith.constant 0 : i32
    return %c0_i32, %c0_i32_0 : i32, i32
  }
  func.func @transform_3(%arg0: i32) -> (i32, i32) {
    %c0_i32 = arith.constant 0 : i32
    %c0_i32_0 = arith.constant 0 : i32
    %c0_i32_1 = arith.constant 0 : i32
    return %c0_i32, %c0_i32_0 : i32, i32
  }
  func.func @transform_4(%arg0: i32) -> (i32, i32) {
    %c0_i32 = arith.constant 0 : i32
    %c0_i32_0 = arith.constant 0 : i32
    %c0_i32_1 = arith.constant 0 : i32
    return %c0_i32, %c0_i32_0 : i32, i32
  }
  func.func @transform_5(%arg0: i32) -> (i32, i32) {
    %c0_i32 = arith.constant 0 : i32
    %c0_i32_0 = arith.constant 0 : i32
    %c0_i32_1 = arith.constant 0 : i32
    return %c0_i32, %c0_i32_0 : i32, i32
  }
  func.func @transform_6(%arg0: i32) -> (i32, i32) {
    %c0_i32 = arith.constant 0 : i32
    %c0_i32_0 = arith.constant 0 : i32
    %c0_i32_1 = arith.constant 0 : i32
    return %c0_i32, %c0_i32_0 : i32, i32
  }
  func.func @transform_7(%arg0: i32) -> (i32, i32) {
    %c0_i32 = arith.constant 0 : i32
    %c0_i32_0 = arith.constant 0 : i32
    return %arg0, %c0_i32 : i32, i32
  }
}

</mosaic_0001>

<llo_original>
// kernel: actor_forward.1
$region0: #{actor_forward.1}
  #allocation0 [shape = 'u32[]', space=smem, size = 0x4, offset = 0x4, fixed_abs, tag = 'smem constant byte address 0x4 - core index']
  #allocation1 [shape = 'u32[144,128]{1,0:T(1,128)}', space=vmem, size = 0x12000, scoped, tag = 'internal scratch']
  %s0 = inlined_call_operand.vmem [shape: bf16[16,128], index: 0, kind: input, shape index: {}]
  %s1 = inlined_call_operand.vmem [shape: bf16[128,512], index: 1, kind: input, shape index: {}]
  %s2 = inlined_call_operand.vmem [shape: f32[1,512], index: 2, kind: input, shape index: {}]
  %s3 = inlined_call_operand.vmem [shape: bf16[512,256], index: 3, kind: input, shape index: {}]
  %s4 = inlined_call_operand.vmem [shape: f32[1,256], index: 4, kind: input, shape index: {}]
  %s5 = inlined_call_operand.vmem [shape: bf16[256,42], index: 5, kind: input, shape index: {}]
  %s6 = inlined_call_operand.vmem [shape: f32[1,42], index: 6, kind: input, shape index: {}]
  %s7 = inlined_call_operand.vmem [shape: f32[16,42], index: 7, kind: output, shape index: {}]
  %s8 = sld [smem:[#allocation0]]
  $region38: #{actor_forward.1} parent=0
    _
  %s10 = ssub.s32 1, %s8
  %s11 = scalar_select 0, %s10, %s8
  // Predicated region
  $region2: #{actor_forward.1} parent=0 // pred_check
    _
  $region3: #{actor_forward.1} parent=0 // pred_check_branch
    %13 = sbr.rel (0) target = $region5
  $region4: #{actor_forward.1} parent=0 // pred_region
    _
  $region5: #{actor_forward.1} parent=0 // pred_fallthru
    _
  // Predicated region
  $region6: #{actor_forward.1} parent=0 // pred_check
    _
  $region7: #{actor_forward.1} parent=0 // pred_check_branch
    %15 = sbr.rel (0) target = $region9
  $region8: #{actor_forward.1} parent=0 // pred_region
    _
  $region9: #{actor_forward.1} parent=0 // pred_fallthru
    _
  // Predicated region
  $region10: #{actor_forward.1} parent=0 // pred_check
    _
  $region11: #{actor_forward.1} parent=0 // pred_check_branch
    %17 = sbr.rel (0) target = $region13
  $region12: #{actor_forward.1} parent=0 // pred_region
    _
  $region13: #{actor_forward.1} parent=0 // pred_fallthru
    _
  // Predicated region
  $region14: #{actor_forward.1} parent=0 // pred_check
    _
  $region15: #{actor_forward.1} parent=0 // pred_check_branch
    %19 = sbr.rel (0) target = $region17
  $region16: #{actor_forward.1} parent=0 // pred_region
    _
  $region17: #{actor_forward.1} parent=0 // pred_fallthru
    _
  // Predicated region
  $region18: #{actor_forward.1} parent=0 // pred_check
    _
  $region19: #{actor_forward.1} parent=0 // pred_check_branch
    %21 = sbr.rel (0) target = $region21
  $region20: #{actor_forward.1} parent=0 // pred_region
    _
  $region21: #{actor_forward.1} parent=0 // pred_fallthru
    _
  // Predicated region
  $region22: #{actor_forward.1} parent=0 // pred_check
    _
  $region23: #{actor_forward.1} parent=0 // pred_check_branch
    %23 = sbr.rel (0) target = $region25
  $region24: #{actor_forward.1} parent=0 // pred_region
    _
  $region25: #{actor_forward.1} parent=0 // pred_fallthru
    _
  // Predicated region
  $region26: #{actor_forward.1} parent=0 // pred_check
    _
  $region27: #{actor_forward.1} parent=0 // pred_check_branch
    %25 = sbr.rel (0) target = $region29
  $region28: #{actor_forward.1} parent=0 // pred_region
    _
  $region29: #{actor_forward.1} parent=0 // pred_fallthru
    _
  %v27 = vld [vmem:[%s0] sm:$0xf]
  %v28 = vld [vmem:[%s0 + $0x4] sm:$0xf]
  %v29 = vld [vmem:[%s1] sm:$0xff]
  %v30 = vld [vmem:[%s1 + $0x8] sm:$0xff]
  %v31 = vld [vmem:[%s1 + $0x10] sm:$0xff]
  %v32 = vld [vmem:[%s1 + $0x18] sm:$0xff]
  %v33 = vld [vmem:[%s1 + $0x20] sm:$0xff]
  %v34 = vld [vmem:[%s1 + $0x28] sm:$0xff]
  %v35 = vld [vmem:[%s1 + $0x30] sm:$0xff]
  %v36 = vld [vmem:[%s1 + $0x38] sm:$0xff]
  %v37 = vld [vmem:[%s1 + $0x40] sm:$0xff]
  %v38 = vld [vmem:[%s1 + $0x48] sm:$0xff]
  %v39 = vld [vmem:[%s1 + $0x50] sm:$0xff]
  %v40 = vld [vmem:[%s1 + $0x58] sm:$0xff]
  %v41 = vld [vmem:[%s1 + $0x60] sm:$0xff]
  %v42 = vld [vmem:[%s1 + $0x68] sm:$0xff]
  %v43 = vld [vmem:[%s1 + $0x70] sm:$0xff]
  %v44 = vld [vmem:[%s1 + $0x78] sm:$0xff]
  %v45 = vld [vmem:[%s1 + $0x80] sm:$0xff]
  %v46 = vld [vmem:[%s1 + $0x88] sm:$0xff]
  %v47 = vld [vmem:[%s1 + $0x90] sm:$0xff]
  %v48 = vld [vmem:[%s1 + $0x98] sm:$0xff]
  %v49 = vld [vmem:[%s1 + $0xa0] sm:$0xff]
  %v50 = vld [vmem:[%s1 + $0xa8] sm:$0xff]
  %v51 = vld [vmem:[%s1 + $0xb0] sm:$0xff]
  %v52 = vld [vmem:[%s1 + $0xb8] sm:$0xff]
  %v53 = vld [vmem:[%s1 + $0xc0] sm:$0xff]
  %v54 = vld [vmem:[%s1 + $0xc8] sm:$0xff]
  %v55 = vld [vmem:[%s1 + $0xd0] sm:$0xff]
  %v56 = vld [vmem:[%s1 + $0xd8] sm:$0xff]
  %v57 = vld [vmem:[%s1 + $0xe0] sm:$0xff]
  %v58 = vld [vmem:[%s1 + $0xe8] sm:$0xff]
  %v59 = vld [vmem:[%s1 + $0xf0] sm:$0xff]
  %v60 = vld [vmem:[%s1 + $0xf8] sm:$0xff]
  %v61 = vld [vmem:[%s2] sm:$0xf]
  %v63 = vlaneseq
  %v64 = vshrl.u32 %v63, 7
  %v65 = vsub.s32 0, %v64
  %v66 = vrot.slane %v61, %v65
  %v67 = vlaneseq
  %v68 = vshrl.u32 %v67, 7
  %v69 = vsub.s32 1, %v68
  %v70 = vrot.slane %v61, %v69
  %v71 = vlaneseq
  %v72 = vshrl.u32 %v71, 7
  %v73 = vsub.s32 2, %v72
  %v74 = vrot.slane %v61, %v73
  %v75 = vlaneseq
  %v76 = vshrl.u32 %v75, 7
  %v77 = vsub.s32 3, %v76
  %v78 = vrot.slane %v61, %v77
  %v85 = vunpack.c.l.b16 %v27
  %v86 = vunpack.c.l.b16 %v28
  %v87 = vpack.c.b16 %v86, %v85
  %v121 = vunpack.c.l.b16 %v29
  %v122 = vunpack.c.h.b16 %v29
  %v123 = vunpack.c.l.b16 %v30
  %v124 = vunpack.c.h.b16 %v30
  %v125 = vunpack.c.l.b16 %v31
  %v126 = vunpack.c.h.b16 %v31
  %v127 = vunpack.c.l.b16 %v32
  %v128 = vunpack.c.h.b16 %v32
  %v129 = vunpack.c.l.b16 %v33
  %v130 = vunpack.c.h.b16 %v33
  %v131 = vunpack.c.l.b16 %v34
  %v132 = vunpack.c.h.b16 %v34
  %v133 = vunpack.c.l.b16 %v35
  %v134 = vunpack.c.h.b16 %v35
  %v135 = vunpack.c.l.b16 %v36
  %v136 = vunpack.c.h.b16 %v36
  %v137 = vunpack.c.l.b16 %v37
  %v138 = vunpack.c.h.b16 %v37
  %v139 = vunpack.c.l.b16 %v38
  %v140 = vunpack.c.h.b16 %v38
  %v141 = vunpack.c.l.b16 %v39
  %v142 = vunpack.c.h.b16 %v39
  %v143 = vunpack.c.l.b16 %v40
  %v144 = vunpack.c.h.b16 %v40
  %v145 = vunpack.c.l.b16 %v41
  %v146 = vunpack.c.h.b16 %v41
  %v147 = vunpack.c.l.b16 %v42
  %v148 = vunpack.c.h.b16 %v42
  %v149 = vunpack.c.l.b16 %v43
  %v150 = vunpack.c.h.b16 %v43
  %v151 = vunpack.c.l.b16 %v44
  %v152 = vunpack.c.h.b16 %v44
  %v153 = vunpack.c.l.b16 %v45
  %v154 = vunpack.c.h.b16 %v45
  %v155 = vunpack.c.l.b16 %v46
  %v156 = vunpack.c.h.b16 %v46
  %v157 = vunpack.c.l.b16 %v47
  %v158 = vunpack.c.h.b16 %v47
  %v159 = vunpack.c.l.b16 %v48
  %v160 = vunpack.c.h.b16 %v48
  %v161 = vunpack.c.l.b16 %v49
  %v162 = vunpack.c.h.b16 %v49
  %v163 = vunpack.c.l.b16 %v50
  %v164 = vunpack.c.h.b16 %v50
  %v165 = vunpack.c.l.b16 %v51
  %v166 = vunpack.c.h.b16 %v51
  %v167 = vunpack.c.l.b16 %v52
  %v168 = vunpack.c.h.b16 %v52
  %v169 = vunpack.c.l.b16 %v53
  %v170 = vunpack.c.h.b16 %v53
  %v171 = vunpack.c.l.b16 %v54
  %v172 = vunpack.c.h.b16 %v54
  %v173 = vunpack.c.l.b16 %v55
  %v174 = vunpack.c.h.b16 %v55
  %v175 = vunpack.c.l.b16 %v56
  %v176 = vunpack.c.h.b16 %v56
  %v177 = vunpack.c.l.b16 %v57
  %v178 = vunpack.c.h.b16 %v57
  %v179 = vunpack.c.l.b16 %v58
  %v180 = vunpack.c.h.b16 %v58
  %v181 = vunpack.c.l.b16 %v59
  %v182 = vunpack.c.h.b16 %v59
  %v183 = vunpack.c.l.b16 %v60
  %v184 = vunpack.c.h.b16 %v60
  %v185 = vpack.c.b16 %v125, %v121
  %v186 = vpack.c.b16 %v126, %v122
  %v187 = vpack.c.b16 %v127, %v123
  %v188 = vpack.c.b16 %v128, %v124
  %v189 = vpack.c.b16 %v133, %v129
  %v190 = vpack.c.b16 %v134, %v130
  %v191 = vpack.c.b16 %v135, %v131
  %v192 = vpack.c.b16 %v136, %v132
  %v193 = vpack.c.b16 %v141, %v137
  %v194 = vpack.c.b16 %v142, %v138
  %v195 = vpack.c.b16 %v143, %v139
  %v196 = vpack.c.b16 %v144, %v140
  %v197 = vpack.c.b16 %v149, %v145
  %v198 = vpack.c.b16 %v150, %v146
  %v199 = vpack.c.b16 %v151, %v147
  %v200 = vpack.c.b16 %v152, %v148
  %v201 = vpack.c.b16 %v157, %v153
  %v202 = vpack.c.b16 %v158, %v154
  %v203 = vpack.c.b16 %v159, %v155
  %v204 = vpack.c.b16 %v160, %v156
  %v205 = vpack.c.b16 %v165, %v161
  %v206 = vpack.c.b16 %v166, %v162
  %v207 = vpack.c.b16 %v167, %v163
  %v208 = vpack.c.b16 %v168, %v164
  %v209 = vpack.c.b16 %v173, %v169
  %v210 = vpack.c.b16 %v174, %v170
  %v211 = vpack.c.b16 %v175, %v171
  %v212 = vpack.c.b16 %v176, %v172
  %v213 = vpack.c.b16 %v181, %v177
  %v214 = vpack.c.b16 %v182, %v178
  %v215 = vpack.c.b16 %v183, %v179
  %v216 = vpack.c.b16 %v184, %v180
  %249 = vmatprep.subr.bf16.mxu0 %v186
  %250 = vmatpush1.bf16.msra.mxu0 %v185
  %251 = vmatprep.subr.bf16.mxu0 %v190
  %252 = vmatpush1.bf16.msra.mxu0 %v189
  %253 = vmatprep.subr.bf16.mxu0 %v194
  %254 = vmatpush1.bf16.msra.mxu0 %v193
  %255 = vmatprep.subr.bf16.mxu0 %v198
  %256 = vmatpush1.bf16.msra.mxu0 %v197
  %257 = vmatprep.subr.bf16.mxu0 %v202
  %258 = vmatpush1.bf16.msra.mxu0 %v201
  %259 = vmatprep.subr.bf16.mxu0 %v206
  %260 = vmatpush1.bf16.msra.mxu0 %v205
  %261 = vmatprep.subr.bf16.mxu0 %v210
  %262 = vmatpush1.bf16.msra.mxu0 %v209
  %263 = vmatprep.subr.bf16.mxu0 %v214
  %264 = vmatpush1.bf16.msra.mxu0 %v213
  %265 = vmatprep.subr.bf16.mxu0 0
  %266 = vmatpush1.bf16.msra.mxu0 0
  %267 = vmatprep.subr.bf16.mxu0 0
  %268 = vmatpush1.bf16.msra.mxu0 0
  %269 = vmatprep.subr.bf16.mxu0 0
  %270 = vmatpush1.bf16.msra.mxu0 0
  %271 = vmatprep.subr.bf16.mxu0 0
  %272 = vmatpush1.bf16.msra.mxu0 0
  %273 = vmatprep.subr.bf16.mxu0 0
  %274 = vmatpush1.bf16.msra.mxu0 0
  %275 = vmatprep.subr.bf16.mxu0 0
  %276 = vmatpush1.bf16.msra.mxu0 0
  %277 = vmatprep.subr.bf16.mxu0 0
  %278 = vmatpush1.bf16.msra.mxu0 0
  %279 = vmatprep.subr.bf16.mxu0 0
  %280 = vmatpush1.bf16.msra.mxu0 0
  %281 = vmatprep.mubr.bf16.mxu0 0
  %282 = vmatmul.mubr.bf16.gmra.mrb[0].mxu0 %v87
  %v283 = vpop.f32.mrb[0].mxu0
  %v284 = vadd.f32 %v66, %v283
  %v285 = vpop.f32.mrb[0].mxu0
  %v286 = vadd.f32 %v70, %v285
  %v287 = vpop.f32.mrb[0].mxu0
  %v288 = vadd.f32 %v66, %v287
  %v289 = vpop.f32.mrb[0].mxu0
  %v290 = vadd.f32 %v70, %v289
  %291 = vdwg.mxu0
  %292 = vmatprep.subr.bf16.mxu0 %v188
  %293 = vmatpush1.bf16.msra.mxu0 %v187
  %294 = vmatprep.subr.bf16.mxu0 %v192
  %295 = vmatpush1.bf16.msra.mxu0 %v191
  %296 = vmatprep.subr.bf16.mxu0 %v196
  %297 = vmatpush1.bf16.msra.mxu0 %v195
  %298 = vmatprep.subr.bf16.mxu0 %v200
  %299 = vmatpush1.bf16.msra.mxu0 %v199
  %300 = vmatprep.subr.bf16.mxu0 %v204
  %301 = vmatpush1.bf16.msra.mxu0 %v203
  %302 = vmatprep.subr.bf16.mxu0 %v208
  %303 = vmatpush1.bf16.msra.mxu0 %v207
  %304 = vmatprep.subr.bf16.mxu0 %v212
  %305 = vmatpush1.bf16.msra.mxu0 %v211
  %306 = vmatprep.subr.bf16.mxu0 %v216
  %307 = vmatpush1.bf16.msra.mxu0 %v215
  %308 = vmatprep.subr.bf16.mxu0 0
  %309 = vmatpush1.bf16.msra.mxu0 0
  %310 = vmatprep.subr.bf16.mxu0 0
  %311 = vmatpush1.bf16.msra.mxu0 0
  %312 = vmatprep.subr.bf16.mxu0 0
  %313 = vmatpush1.bf16.msra.mxu0 0
  %314 = vmatprep.subr.bf16.mxu0 0
  %315 = vmatpush1.bf16.msra.mxu0 0
  %316 = vmatprep.subr.bf16.mxu0 0
  %317 = vmatpush1.bf16.msra.mxu0 0
  %318 = vmatprep.subr.bf16.mxu0 0
  %319 = vmatpush1.bf16.msra.mxu0 0
  %320 = vmatprep.subr.bf16.mxu0 0
  %321 = vmatpush1.bf16.msra.mxu0 0
  %322 = vmatprep.subr.bf16.mxu0 0
  %323 = vmatpush1.bf16.msra.mxu0 0
  %324 = vmatprep.mubr.bf16.mxu0 0
  %325 = vmatmul.mubr.bf16.gmra.mrb[0].mxu0 %v87
  %v326 = vpop.f32.mrb[0].mxu0
  %v327 = vadd.f32 %v74, %v326
  %v328 = vpop.f32.mrb[0].mxu0
  %v329 = vadd.f32 %v78, %v328
  %v330 = vpop.f32.mrb[0].mxu0
  %v331 = vadd.f32 %v74, %v330
  %v332 = vpop.f32.mrb[0].mxu0
  %v333 = vadd.f32 %v78, %v332
  %334 = vdwg.mxu0
  %v335 = vmax.f32 %v284, 0.0
  %v336 = vmax.f32 %v286, 0.0
  %v337 = vmax.f32 %v327, 0.0
  %v338 = vmax.f32 %v329, 0.0
  %v339 = vmax.f32 %v288, 0.0
  %v340 = vmax.f32 %v290, 0.0
  %v341 = vmax.f32 %v331, 0.0
  %v342 = vmax.f32 %v333, 0.0
  %v343 = vpack.c.bf16 %v339, %v335
  %v344 = vpack.c.bf16 %v340, %v336
  %v345 = vpack.c.bf16 %v341, %v337
  %v346 = vpack.c.bf16 %v342, %v338
  %v347 = vld [vmem:[%s3] sm:$0xff]
  %v348 = vld [vmem:[%s3 + $0x8] sm:$0xff]
  %v349 = vld [vmem:[%s3 + $0x10] sm:$0xff]
  %v350 = vld [vmem:[%s3 + $0x18] sm:$0xff]
  %v351 = vld [vmem:[%s3 + $0x20] sm:$0xff]
  %v352 = vld [vmem:[%s3 + $0x28] sm:$0xff]
  %v353 = vld [vmem:[%s3 + $0x30] sm:$0xff]
  %v354 = vld [vmem:[%s3 + $0x38] sm:$0xff]
  %v355 = vld [vmem:[%s3 + $0x40] sm:$0xff]
  %v356 = vld [vmem:[%s3 + $0x48] sm:$0xff]
  %v357 = vld [vmem:[%s3 + $0x50] sm:$0xff]
  %v358 = vld [vmem:[%s3 + $0x58] sm:$0xff]
  %v359 = vld [vmem:[%s3 + $0x60] sm:$0xff]
  %v360 = vld [vmem:[%s3 + $0x68] sm:$0xff]
  %v361 = vld [vmem:[%s3 + $0x70] sm:$0xff]
  %v362 = vld [vmem:[%s3 + $0x78] sm:$0xff]
  %v363 = vld [vmem:[%s3 + $0x80] sm:$0xff]
  %v364 = vld [vmem:[%s3 + $0x88] sm:$0xff]
  %v365 = vld [vmem:[%s3 + $0x90] sm:$0xff]
  %v366 = vld [vmem:[%s3 + $0x98] sm:$0xff]
  %v367 = vld [vmem:[%s3 + $0xa0] sm:$0xff]
  %v368 = vld [vmem:[%s3 + $0xa8] sm:$0xff]
  %v369 = vld [vmem:[%s3 + $0xb0] sm:$0xff]
  %v370 = vld [vmem:[%s3 + $0xb8] sm:$0xff]
  %v371 = vld [vmem:[%s3 + $0xc0] sm:$0xff]
  %v372 = vld [vmem:[%s3 + $0xc8] sm:$0xff]
  %v373 = vld [vmem:[%s3 + $0xd0] sm:$0xff]
  %v374 = vld [vmem:[%s3 + $0xd8] sm:$0xff]
  %v375 = vld [vmem:[%s3 + $0xe0] sm:$0xff]
  %v376 = vld [vmem:[%s3 + $0xe8] sm:$0xff]
  %v377 = vld [vmem:[%s3 + $0xf0] sm:$0xff]
  %v378 = vld [vmem:[%s3 + $0xf8] sm:$0xff]
  %v379 = vld [vmem:[%s3 + $0x100] sm:$0xff]
  %v380 = vld [vmem:[%s3 + $0x108] sm:$0xff]
  %v381 = vld [vmem:[%s3 + $0x110] sm:$0xff]
  %v382 = vld [vmem:[%s3 + $0x118] sm:$0xff]
  %v383 = vld [vmem:[%s3 + $0x120] sm:$0xff]
  %v384 = vld [vmem:[%s3 + $0x128] sm:$0xff]
  %v385 = vld [vmem:[%s3 + $0x130] sm:$0xff]
  %v386 = vld [vmem:[%s3 + $0x138] sm:$0xff]
  %v387 = vld [vmem:[%s3 + $0x140] sm:$0xff]
  %v388 = vld [vmem:[%s3 + $0x148] sm:$0xff]
  %v389 = vld [vmem:[%s3 + $0x150] sm:$0xff]
  %v390 = vld [vmem:[%s3 + $0x158] sm:$0xff]
  %v391 = vld [vmem:[%s3 + $0x160] sm:$0xff]
  %v392 = vld [vmem:[%s3 + $0x168] sm:$0xff]
  %v393 = vld [vmem:[%s3 + $0x170] sm:$0xff]
  %v394 = vld [vmem:[%s3 + $0x178] sm:$0xff]
  %v395 = vld [vmem:[%s3 + $0x180] sm:$0xff]
  %v396 = vld [vmem:[%s3 + $0x188] sm:$0xff]
  %v397 = vld [vmem:[%s3 + $0x190] sm:$0xff]
  %v398 = vld [vmem:[%s3 + $0x198] sm:$0xff]
  %v399 = vld [vmem:[%s3 + $0x1a0] sm:$0xff]
  %v400 = vld [vmem:[%s3 + $0x1a8] sm:$0xff]
  %v401 = vld [vmem:[%s3 + $0x1b0] sm:$0xff]
  %v402 = vld [vmem:[%s3 + $0x1b8] sm:$0xff]
  %v403 = vld [vmem:[%s3 + $0x1c0] sm:$0xff]
  %v404 = vld [vmem:[%s3 + $0x1c8] sm:$0xff]
  %v405 = vld [vmem:[%s3 + $0x1d0] sm:$0xff]
  %v406 = vld [vmem:[%s3 + $0x1d8] sm:$0xff]
  %v407 = vld [vmem:[%s3 + $0x1e0] sm:$0xff]
  %v408 = vld [vmem:[%s3 + $0x1e8] sm:$0xff]
  %v409 = vld [vmem:[%s3 + $0x1f0] sm:$0xff]
  %v410 = vld [vmem:[%s3 + $0x1f8] sm:$0xff]
  %v411 = vld [vmem:[%s4] sm:$0x3]
  %v413 = vlaneseq
  %v414 = vshrl.u32 %v413, 7
  %v415 = vsub.s32 0, %v414
  %v416 = vrot.slane %v411, %v415
  %v417 = vlaneseq
  %v418 = vshrl.u32 %v417, 7
  %v419 = vsub.s32 1, %v418
  %v420 = vrot.slane %v411, %v419
  %v487 = vunpack.c.l.b16 %v347
  %v488 = vunpack.c.h.b16 %v347
  %v489 = vunpack.c.l.b16 %v348
  %v490 = vunpack.c.h.b16 %v348
  %v491 = vunpack.c.l.b16 %v349
  %v492 = vunpack.c.h.b16 %v349
  %v493 = vunpack.c.l.b16 %v350
  %v494 = vunpack.c.h.b16 %v350
  %v495 = vunpack.c.l.b16 %v351
  %v496 = vunpack.c.h.b16 %v351
  %v497 = vunpack.c.l.b16 %v352
  %v498 = vunpack.c.h.b16 %v352
  %v499 = vunpack.c.l.b16 %v353
  %v500 = vunpack.c.h.b16 %v353
  %v501 = vunpack.c.l.b16 %v354
  %v502 = vunpack.c.h.b16 %v354
  %v503 = vunpack.c.l.b16 %v355
  %v504 = vunpack.c.h.b16 %v355
  %v505 = vunpack.c.l.b16 %v356
  %v506 = vunpack.c.h.b16 %v356
  %v507 = vunpack.c.l.b16 %v357
  %v508 = vunpack.c.h.b16 %v357
  %v509 = vunpack.c.l.b16 %v358
  %v510 = vunpack.c.h.b16 %v358
  %v511 = vunpack.c.l.b16 %v359
  %v512 = vunpack.c.h.b16 %v359
  %v513 = vunpack.c.l.b16 %v360
  %v514 = vunpack.c.h.b16 %v360
  %v515 = vunpack.c.l.b16 %v361
  %v516 = vunpack.c.h.b16 %v361
  %v517 = vunpack.c.l.b16 %v362
  %v518 = vunpack.c.h.b16 %v362
  %v519 = vunpack.c.l.b16 %v363
  %v520 = vunpack.c.h.b16 %v363
  %v521 = vunpack.c.l.b16 %v364
  %v522 = vunpack.c.h.b16 %v364
  %v523 = vunpack.c.l.b16 %v365
  %v524 = vunpack.c.h.b16 %v365
  %v525 = vunpack.c.l.b16 %v366
  %v526 = vunpack.c.h.b16 %v366
  %v527 = vunpack.c.l.b16 %v367
  %v528 = vunpack.c.h.b16 %v367
  %v529 = vunpack.c.l.b16 %v368
  %v530 = vunpack.c.h.b16 %v368
  %v531 = vunpack.c.l.b16 %v369
  %v532 = vunpack.c.h.b16 %v369
  %v533 = vunpack.c.l.b16 %v370
  %v534 = vunpack.c.h.b16 %v370
  %v535 = vunpack.c.l.b16 %v371
  %v536 = vunpack.c.h.b16 %v371
  %v537 = vunpack.c.l.b16 %v372
  %v538 = vunpack.c.h.b16 %v372
  %v539 = vunpack.c.l.b16 %v373
  %v540 = vunpack.c.h.b16 %v373
  %v541 = vunpack.c.l.b16 %v374
  %v542 = vunpack.c.h.b16 %v374
  %v543 = vunpack.c.l.b16 %v375
  %v544 = vunpack.c.h.b16 %v375
  %v545 = vunpack.c.l.b16 %v376
  %v546 = vunpack.c.h.b16 %v376
  %v547 = vunpack.c.l.b16 %v377
  %v548 = vunpack.c.h.b16 %v377
  %v549 = vunpack.c.l.b16 %v378
  %v550 = vunpack.c.h.b16 %v378
  %v551 = vunpack.c.l.b16 %v379
  %v552 = vunpack.c.h.b16 %v379
  %v553 = vunpack.c.l.b16 %v380
  %v554 = vunpack.c.h.b16 %v380
  %v555 = vunpack.c.l.b16 %v381
  %v556 = vunpack.c.h.b16 %v381
  %v557 = vunpack.c.l.b16 %v382
  %v558 = vunpack.c.h.b16 %v382
  %v559 = vunpack.c.l.b16 %v383
  %v560 = vunpack.c.h.b16 %v383
  %v561 = vunpack.c.l.b16 %v384
  %v562 = vunpack.c.h.b16 %v384
  %v563 = vunpack.c.l.b16 %v385
  %v564 = vunpack.c.h.b16 %v385
  %v565 = vunpack.c.l.b16 %v386
  %v566 = vunpack.c.h.b16 %v386
  %v567 = vunpack.c.l.b16 %v387
  %v568 = vunpack.c.h.b16 %v387
  %v569 = vunpack.c.l.b16 %v388
  %v570 = vunpack.c.h.b16 %v388
  %v571 = vunpack.c.l.b16 %v389
  %v572 = vunpack.c.h.b16 %v389
  %v573 = vunpack.c.l.b16 %v390
  %v574 = vunpack.c.h.b16 %v390
  %v575 = vunpack.c.l.b16 %v391
  %v576 = vunpack.c.h.b16 %v391
  %v577 = vunpack.c.l.b16 %v392
  %v578 = vunpack.c.h.b16 %v392
  %v579 = vunpack.c.l.b16 %v393
  %v580 = vunpack.c.h.b16 %v393
  %v581 = vunpack.c.l.b16 %v394
  %v582 = vunpack.c.h.b16 %v394
  %v583 = vunpack.c.l.b16 %v395
  %v584 = vunpack.c.h.b16 %v395
  %v585 = vunpack.c.l.b16 %v396
  %v586 = vunpack.c.h.b16 %v396
  %v587 = vunpack.c.l.b16 %v397
  %v588 = vunpack.c.h.b16 %v397
  %v589 = vunpack.c.l.b16 %v398
  %v590 = vunpack.c.h.b16 %v398
  %v591 = vunpack.c.l.b16 %v399
  %v592 = vunpack.c.h.b16 %v399
  %v593 = vunpack.c.l.b16 %v400
  %v594 = vunpack.c.h.b16 %v400
  %v595 = vunpack.c.l.b16 %v401
  %v596 = vunpack.c.h.b16 %v401
  %v597 = vunpack.c.l.b16 %v402
  %v598 = vunpack.c.h.b16 %v402
  %v599 = vunpack.c.l.b16 %v403
  %v600 = vunpack.c.h.b16 %v403
  %v601 = vunpack.c.l.b16 %v404
  %v602 = vunpack.c.h.b16 %v404
  %v603 = vunpack.c.l.b16 %v405
  %v604 = vunpack.c.h.b16 %v405
  %v605 = vunpack.c.l.b16 %v406
  %v606 = vunpack.c.h.b16 %v406
  %v607 = vunpack.c.l.b16 %v407
  %v608 = vunpack.c.h.b16 %v407
  %v609 = vunpack.c.l.b16 %v408
  %v610 = vunpack.c.h.b16 %v408
  %v611 = vunpack.c.l.b16 %v409
  %v612 = vunpack.c.h.b16 %v409
  %v613 = vunpack.c.l.b16 %v410
  %v614 = vunpack.c.h.b16 %v410
  %v615 = vpack.c.b16 %v489, %v487
  %v616 = vpack.c.b16 %v490, %v488
  %v617 = vpack.c.b16 %v493, %v491
  %v618 = vpack.c.b16 %v494, %v492
  %v619 = vpack.c.b16 %v497, %v495
  %v620 = vpack.c.b16 %v498, %v496
  %v621 = vpack.c.b16 %v501, %v499
  %v622 = vpack.c.b16 %v502, %v500
  %v623 = vpack.c.b16 %v505, %v503
  %v624 = vpack.c.b16 %v506, %v504
  %v625 = vpack.c.b16 %v509, %v507
  %v626 = vpack.c.b16 %v510, %v508
  %v627 = vpack.c.b16 %v513, %v511
  %v628 = vpack.c.b16 %v514, %v512
  %v629 = vpack.c.b16 %v517, %v515
  %v630 = vpack.c.b16 %v518, %v516
  %v631 = vpack.c.b16 %v521, %v519
  %v632 = vpack.c.b16 %v522, %v520
  %v633 = vpack.c.b16 %v525, %v523
  %v634 = vpack.c.b16 %v526, %v524
  %v635 = vpack.c.b16 %v529, %v527
  %v636 = vpack.c.b16 %v530, %v528
  %v637 = vpack.c.b16 %v533, %v531
  %v638 = vpack.c.b16 %v534, %v532
  %v639 = vpack.c.b16 %v537, %v535
  %v640 = vpack.c.b16 %v538, %v536
  %v641 = vpack.c.b16 %v541, %v539
  %v642 = vpack.c.b16 %v542, %v540
  %v643 = vpack.c.b16 %v545, %v543
  %v644 = vpack.c.b16 %v546, %v544
  %v645 = vpack.c.b16 %v549, %v547
  %v646 = vpack.c.b16 %v550, %v548
  %v647 = vpack.c.b16 %v553, %v551
  %v648 = vpack.c.b16 %v554, %v552
  %v649 = vpack.c.b16 %v557, %v555
  %v650 = vpack.c.b16 %v558, %v556
  %v651 = vpack.c.b16 %v561, %v559
  %v652 = vpack.c.b16 %v562, %v560
  %v653 = vpack.c.b16 %v565, %v563
  %v654 = vpack.c.b16 %v566, %v564
  %v655 = vpack.c.b16 %v569, %v567
  %v656 = vpack.c.b16 %v570, %v568
  %v657 = vpack.c.b16 %v573, %v571
  %v658 = vpack.c.b16 %v574, %v572
  %v659 = vpack.c.b16 %v577, %v575
  %v660 = vpack.c.b16 %v578, %v576
  %v661 = vpack.c.b16 %v581, %v579
  %v662 = vpack.c.b16 %v582, %v580
  %v663 = vpack.c.b16 %v585, %v583
  %v664 = vpack.c.b16 %v586, %v584
  %v665 = vpack.c.b16 %v589, %v587
  %v666 = vpack.c.b16 %v590, %v588
  %v667 = vpack.c.b16 %v593, %v591
  %v668 = vpack.c.b16 %v594, %v592
  %v669 = vpack.c.b16 %v597, %v595
  %v670 = vpack.c.b16 %v598, %v596
  %v671 = vpack.c.b16 %v601, %v599
  %v672 = vpack.c.b16 %v602, %v600
  %v673 = vpack.c.b16 %v605, %v603
  %v674 = vpack.c.b16 %v606, %v604
  %v675 = vpack.c.b16 %v609, %v607
  %v676 = vpack.c.b16 %v610, %v608
  %v677 = vpack.c.b16 %v613, %v611
  %v678 = vpack.c.b16 %v614, %v612
  %743 = vmatprep.subr.bf16.mxu0 %v616
  %744 = vmatpush1.bf16.msra.mxu0 %v615
  %745 = vmatprep.subr.bf16.mxu0 %v618
  %746 = vmatpush1.bf16.msra.mxu0 %v617
  %747 = vmatprep.subr.bf16.mxu0 %v620
  %748 = vmatpush1.bf16.msra.mxu0 %v619
  %749 = vmatprep.subr.bf16.mxu0 %v622
  %750 = vmatpush1.bf16.msra.mxu0 %v621
  %751 = vmatprep.subr.bf16.mxu0 %v624
  %752 = vmatpush1.bf16.msra.mxu0 %v623
  %753 = vmatprep.subr.bf16.mxu0 %v626
  %754 = vmatpush1.bf16.msra.mxu0 %v625
  %755 = vmatprep.subr.bf16.mxu0 %v628
  %756 = vmatpush1.bf16.msra.mxu0 %v627
  %757 = vmatprep.subr.bf16.mxu0 %v630
  %758 = vmatpush1.bf16.msra.mxu0 %v629
  %759 = vmatprep.subr.bf16.mxu0 %v632
  %760 = vmatpush1.bf16.msra.mxu0 %v631
  %761 = vmatprep.subr.bf16.mxu0 %v634
  %762 = vmatpush1.bf16.msra.mxu0 %v633
  %763 = vmatprep.subr.bf16.mxu0 %v636
  %764 = vmatpush1.bf16.msra.mxu0 %v635
  %765 = vmatprep.subr.bf16.mxu0 %v638
  %766 = vmatpush1.bf16.msra.mxu0 %v637
  %767 = vmatprep.subr.bf16.mxu0 %v640
  %768 = vmatpush1.bf16.msra.mxu0 %v639
  %769 = vmatprep.subr.bf16.mxu0 %v642
  %770 = vmatpush1.bf16.msra.mxu0 %v641
  %771 = vmatprep.subr.bf16.mxu0 %v644
  %772 = vmatpush1.bf16.msra.mxu0 %v643
  %773 = vmatprep.subr.bf16.mxu0 %v646
  %774 = vmatpush1.bf16.msra.mxu0 %v645
  %775 = vmatprep.mubr.bf16.mxu0 %v344
  %776 = vmatmul.mubr.bf16.gmra.mrb[0].mxu0 %v343
  %v777 = vpop.f32.mrb[0].mxu0
  %v778 = vadd.f32 %v416, %v777
  %v779 = vpop.f32.mrb[0].mxu0
  %v780 = vadd.f32 %v420, %v779
  %v781 = vpop.f32.mrb[0].mxu0
  %v782 = vadd.f32 %v416, %v781
  %v783 = vpop.f32.mrb[0].mxu0
  %v784 = vadd.f32 %v420, %v783
  %785 = vdwg.mxu0
  %786 = vmatprep.subr.bf16.mxu0 %v648
  %787 = vmatpush1.bf16.msra.mxu0 %v647
  %788 = vmatprep.subr.bf16.mxu0 %v650
  %789 = vmatpush1.bf16.msra.mxu0 %v649
  %790 = vmatprep.subr.bf16.mxu0 %v652
  %791 = vmatpush1.bf16.msra.mxu0 %v651
  %792 = vmatprep.subr.bf16.mxu0 %v654
  %793 = vmatpush1.bf16.msra.mxu0 %v653
  %794 = vmatprep.subr.bf16.mxu0 %v656
  %795 = vmatpush1.bf16.msra.mxu0 %v655
  %796 = vmatprep.subr.bf16.mxu0 %v658
  %797 = vmatpush1.bf16.msra.mxu0 %v657
  %798 = vmatprep.subr.bf16.mxu0 %v660
  %799 = vmatpush1.bf16.msra.mxu0 %v659
  %800 = vmatprep.subr.bf16.mxu0 %v662
  %801 = vmatpush1.bf16.msra.mxu0 %v661
  %802 = vmatprep.subr.bf16.mxu0 %v664
  %803 = vmatpush1.bf16.msra.mxu0 %v663
  %804 = vmatprep.subr.bf16.mxu0 %v666
  %805 = vmatpush1.bf16.msra.mxu0 %v665
  %806 = vmatprep.subr.bf16.mxu0 %v668
  %807 = vmatpush1.bf16.msra.mxu0 %v667
  %808 = vmatprep.subr.bf16.mxu0 %v670
  %809 = vmatpush1.bf16.msra.mxu0 %v669
  %810 = vmatprep.subr.bf16.mxu0 %v672
  %811 = vmatpush1.bf16.msra.mxu0 %v671
  %812 = vmatprep.subr.bf16.mxu0 %v674
  %813 = vmatpush1.bf16.msra.mxu0 %v673
  %814 = vmatprep.subr.bf16.mxu0 %v676
  %815 = vmatpush1.bf16.msra.mxu0 %v675
  %816 = vmatprep.subr.bf16.mxu0 %v678
  %817 = vmatpush1.bf16.msra.mxu0 %v677
  %818 = vmatprep.mubr.bf16.mxu0 %v346
  %819 = vmatmul.mubr.bf16.gmra.mrb[0].mxu0 %v345
  %v820 = vpop.f32.mrb[0].mxu0
  %v821 = vadd.f32 %v778, %v820
  %v822 = vpop.f32.mrb[0].mxu0
  %v823 = vadd.f32 %v780, %v822
  %v824 = vpop.f32.mrb[0].mxu0
  %v825 = vadd.f32 %v782, %v824
  %v826 = vpop.f32.mrb[0].mxu0
  %v827 = vadd.f32 %v784, %v826
  %828 = vdwg.mxu0
  %v829 = vmax.f32 %v821, 0.0
  %v830 = vmax.f32 %v823, 0.0
  %v831 = vmax.f32 %v825, 0.0
  %v832 = vmax.f32 %v827, 0.0
  %v833 = vpack.c.bf16 %v831, %v829
  %v834 = vpack.c.bf16 %v832, %v830
  %v835 = vld [vmem:[%s5] sm:$0xf]
  %v836 = vld [vmem:[%s5 + $0x4] sm:$0xf]
  %v837 = vld [vmem:[%s5 + $0x8] sm:$0xf]
  %v838 = vld [vmem:[%s5 + $0xc] sm:$0xf]
  %v839 = vld [vmem:[%s5 + $0x10] sm:$0xf]
  %v840 = vld [vmem:[%s5 + $0x14] sm:$0xf]
  %v841 = vld [vmem:[%s5 + $0x18] sm:$0xf]
  %v842 = vld [vmem:[%s5 + $0x1c] sm:$0xf]
  %v843 = vld [vmem:[%s5 + $0x20] sm:$0xf]
  %v844 = vld [vmem:[%s5 + $0x24] sm:$0xf]
  %v845 = vld [vmem:[%s5 + $0x28] sm:$0xf]
  %v846 = vld [vmem:[%s5 + $0x2c] sm:$0xf]
  %v847 = vld [vmem:[%s5 + $0x30] sm:$0xf]
  %v848 = vld [vmem:[%s5 + $0x34] sm:$0xf]
  %v849 = vld [vmem:[%s5 + $0x38] sm:$0xf]
  %v850 = vld [vmem:[%s5 + $0x3c] sm:$0xf]
  %v851 = vld [vmem:[%s5 + $0x40] sm:$0xf]
  %v852 = vld [vmem:[%s5 + $0x44] sm:$0xf]
  %v853 = vld [vmem:[%s5 + $0x48] sm:$0xf]
  %v854 = vld [vmem:[%s5 + $0x4c] sm:$0xf]
  %v855 = vld [vmem:[%s5 + $0x50] sm:$0xf]
  %v856 = vld [vmem:[%s5 + $0x54] sm:$0xf]
  %v857 = vld [vmem:[%s5 + $0x58] sm:$0xf]
  %v858 = vld [vmem:[%s5 + $0x5c] sm:$0xf]
  %v859 = vld [vmem:[%s5 + $0x60] sm:$0xf]
  %v860 = vld [vmem:[%s5 + $0x64] sm:$0xf]
  %v861 = vld [vmem:[%s5 + $0x68] sm:$0xf]
  %v862 = vld [vmem:[%s5 + $0x6c] sm:$0xf]
  %v863 = vld [vmem:[%s5 + $0x70] sm:$0xf]
  %v864 = vld [vmem:[%s5 + $0x74] sm:$0xf]
  %v865 = vld [vmem:[%s5 + $0x78] sm:$0xf]
  %v866 = vld [vmem:[%s5 + $0x7c] sm:$0xf]
  %v867 = vld [vmem:[%s6] sm:$0x1]
  %v869 = vlaneseq
  %v870 = vshrl.u32 %v869, 7
  %v871 = vsub.s32 0, %v870
  %v872 = vrot.slane %v867, %v871
  %v906 = vunpack.c.l.b16 %v835
  %v907 = vunpack.c.l.b16 %v836
  %v908 = vunpack.c.l.b16 %v837
  %v909 = vunpack.c.l.b16 %v838
  %v910 = vunpack.c.l.b16 %v839
  %v911 = vunpack.c.l.b16 %v840
  %v912 = vunpack.c.l.b16 %v841
  %v913 = vunpack.c.l.b16 %v842
  %v914 = vunpack.c.l.b16 %v843
  %v915 = vunpack.c.l.b16 %v844
  %v916 = vunpack.c.l.b16 %v845
  %v917 = vunpack.c.l.b16 %v846
  %v918 = vunpack.c.l.b16 %v847
  %v919 = vunpack.c.l.b16 %v848
  %v920 = vunpack.c.l.b16 %v849
  %v921 = vunpack.c.l.b16 %v850
  %v922 = vunpack.c.l.b16 %v851
  %v923 = vunpack.c.l.b16 %v852
  %v924 = vunpack.c.l.b16 %v853
  %v925 = vunpack.c.l.b16 %v854
  %v926 = vunpack.c.l.b16 %v855
  %v927 = vunpack.c.l.b16 %v856
  %v928 = vunpack.c.l.b16 %v857
  %v929 = vunpack.c.l.b16 %v858
  %v930 = vunpack.c.l.b16 %v859
  %v931 = vunpack.c.l.b16 %v860
  %v932 = vunpack.c.l.b16 %v861
  %v933 = vunpack.c.l.b16 %v862
  %v934 = vunpack.c.l.b16 %v863
  %v935 = vunpack.c.l.b16 %v864
  %v936 = vunpack.c.l.b16 %v865
  %v937 = vunpack.c.l.b16 %v866
  %v938 = vpack.c.b16 %v907, %v906
  %v939 = vpack.c.b16 %v909, %v908
  %v940 = vpack.c.b16 %v911, %v910
  %v941 = vpack.c.b16 %v913, %v912
  %v942 = vpack.c.b16 %v915, %v914
  %v943 = vpack.c.b16 %v917, %v916
  %v944 = vpack.c.b16 %v919, %v918
  %v945 = vpack.c.b16 %v921, %v920
  %v946 = vpack.c.b16 %v923, %v922
  %v947 = vpack.c.b16 %v925, %v924
  %v948 = vpack.c.b16 %v927, %v926
  %v949 = vpack.c.b16 %v929, %v928
  %v950 = vpack.c.b16 %v931, %v930
  %v951 = vpack.c.b16 %v933, %v932
  %v952 = vpack.c.b16 %v935, %v934
  %v953 = vpack.c.b16 %v937, %v936
  %970 = vmatprep.subr.bf16.mxu0 0
  %971 = vmatpush1.bf16.msra.mxu0 %v938
  %972 = vmatprep.subr.bf16.mxu0 0
  %973 = vmatpush1.bf16.msra.mxu0 %v939
  %974 = vmatprep.subr.bf16.mxu0 0
  %975 = vmatpush1.bf16.msra.mxu0 %v940
  %976 = vmatprep.subr.bf16.mxu0 0
  %977 = vmatpush1.bf16.msra.mxu0 %v941
  %978 = vmatprep.subr.bf16.mxu0 0
  %979 = vmatpush1.bf16.msra.mxu0 %v942
  %980 = vmatprep.subr.bf16.mxu0 0
  %981 = vmatpush1.bf16.msra.mxu0 %v943
  %982 = vmatprep.subr.bf16.mxu0 0
  %983 = vmatpush1.bf16.msra.mxu0 %v944
  %984 = vmatprep.subr.bf16.mxu0 0
  %985 = vmatpush1.bf16.msra.mxu0 %v945
  %986 = vmatprep.subr.bf16.mxu0 0
  %987 = vmatpush1.bf16.msra.mxu0 %v946
  %988 = vmatprep.subr.bf16.mxu0 0
  %989 = vmatpush1.bf16.msra.mxu0 %v947
  %990 = vmatprep.subr.bf16.mxu0 0
  %991 = vmatpush1.bf16.msra.mxu0 %v948
  %992 = vmatprep.subr.bf16.mxu0 0
  %993 = vmatpush1.bf16.msra.mxu0 %v949
  %994 = vmatprep.subr.bf16.mxu0 0
  %995 = vmatpush1.bf16.msra.mxu0 %v950
  %996 = vmatprep.subr.bf16.mxu0 0
  %997 = vmatpush1.bf16.msra.mxu0 %v951
  %998 = vmatprep.subr.bf16.mxu0 0
  %999 = vmatpush1.bf16.msra.mxu0 %v952
  %1000 = vmatprep.subr.bf16.mxu0 0
  %1001 = vmatpush1.bf16.msra.mxu0 %v953
  %1002 = vmatprep.mubr.bf16.mxu0 %v834
  %1003 = vmatmul.mubr.bf16.gmra.mrb[0].mxu0 %v833
  %v1004 = vpop.f32.mrb[0].mxu0
  %v1005 = vadd.f32 %v872, %v1004
  %v1006 = vpop.f32.mrb[0].mxu0
  %v1007 = vpop.f32.mrb[0].mxu0
  %v1008 = vadd.f32 %v872, %v1007
  %v1009 = vpop.f32.mrb[0].mxu0
  %1010 = vdwg.mxu0
  %v1011 = vlaneseq
  %v1012 = vand.u32 %v1011, 127
  %vm1013 = vcmp.ge.s32.totalorder %v1012, 0
  %vm1014 = vcmp.lt.s32.totalorder %v1012, 4
  %vm1015 = vmand %vm1013, %vm1014
  %v1016 = vsel %vm1015, %v1005, -3.4028235e+38
  %v1017 = vsel %vm1015, %v1008, -3.4028235e+38
  %vm1018 = vcmask 343040
  %v1019 = vsel %vm1018, %v1016, -inf
  %1020 = vmax.xlane.f32.xlu0 %v1019
  %v1021 = vpop.xlane.xlu0 %1020
  %v1022 = vsel %vm1018, %v1017, -inf
  %1023 = vmax.xlane.f32.xlu0 %v1022
  %v1024 = vpop.xlane.xlu0 %1023
  %v1025 = vsel %vm1015, %v1021, -3.4028235e+38
  %v1026 = vsel %vm1015, %v1024, -3.4028235e+38
  %vm1027 = vcmp.ge.s32.totalorder %v1012, 4
  %vm1028 = vcmp.lt.s32.totalorder %v1012, 21
  %vm1029 = vmand %vm1027, %vm1028
  %v1030 = vsel %vm1029, %v1005, -3.4028235e+38
  %v1031 = vsel %vm1029, %v1008, -3.4028235e+38
  %v1032 = vsel %vm1018, %v1030, -inf
  %1033 = vmax.xlane.f32.xlu0 %v1032
  %v1034 = vpop.xlane.xlu0 %1033
  %v1035 = vsel %vm1018, %v1031, -inf
  %1036 = vmax.xlane.f32.xlu0 %v1035
  %v1037 = vpop.xlane.xlu0 %1036
  %v1038 = vsel %vm1029, %v1034, %v1025
  %v1039 = vsel %vm1029, %v1037, %v1026
  %vm1040 = vcmp.ge.s32.totalorder %v1012, 21
  %vm1041 = vcmp.lt.s32.totalorder %v1012, 25
  %vm1042 = vmand %vm1040, %vm1041
  %v1043 = vsel %vm1042, %v1005, -3.4028235e+38
  %v1044 = vsel %vm1042, %v1008, -3.4028235e+38
  %v1045 = vsel %vm1018, %v1043, -inf
  %1046 = vmax.xlane.f32.xlu0 %v1045
  %v1047 = vpop.xlane.xlu0 %1046
  %v1048 = vsel %vm1018, %v1044, -inf
  %1049 = vmax.xlane.f32.xlu0 %v1048
  %v1050 = vpop.xlane.xlu0 %1049
  %v1051 = vsel %vm1042, %v1047, %v1038
  %v1052 = vsel %vm1042, %v1050, %v1039
  %vm1053 = vcmp.ge.s32.totalorder %v1012, 25
  %vm1054 = vcmp.lt.s32.totalorder %v1012, 42
  %vm1055 = vmand %vm1053, %vm1054
  %v1056 = vsel %vm1055, %v1005, -3.4028235e+38
  %v1057 = vsel %vm1055, %v1008, -3.4028235e+38
  %v1058 = vsel %vm1018, %v1056, -inf
  %1059 = vmax.xlane.f32.xlu0 %v1058
  %v1060 = vpop.xlane.xlu0 %1059
  %v1061 = vsel %vm1018, %v1057, -inf
  %1062 = vmax.xlane.f32.xlu0 %v1061
  %v1063 = vpop.xlane.xlu0 %1062
  %v1064 = vsel %vm1055, %v1060, %v1051
  %v1065 = vsel %vm1055, %v1063, %v1052
  %v1066 = vsub.f32 %v1005, %v1064
  %v1067 = vsub.f32 %v1008, %v1065
  %v1068 = vmul.f32 %v1066, 1.442695
  %v1069 = vpow.pop %v1068
  %v1070 = vmul.f32 %v1067, 1.442695
  %v1071 = vpow.pop %v1070
  %v1072 = vsel %vm1015, %v1069, 0.0
  %v1073 = vsel %vm1015, %v1071, 0.0
  %v1074 = vsel %vm1018, %v1072, 0.0
  %1075 = vadd.xlane.f32.xlu0 %v1074
  %v1076 = vpop.xlane.xlu0 %1075
  %v1077 = vsel %vm1018, %v1073, 0.0
  %1078 = vadd.xlane.f32.xlu0 %v1077
  %v1079 = vpop.xlane.xlu0 %1078
  %v1080 = vsel %vm1015, %v1076, 1.0
  %v1081 = vsel %vm1015, %v1079, 1.0
  %v1082 = vsel %vm1029, %v1069, 0.0
  %v1083 = vsel %vm1029, %v1071, 0.0
  %v1084 = vsel %vm1018, %v1082, 0.0
  %1085 = vadd.xlane.f32.xlu0 %v1084
  %v1086 = vpop.xlane.xlu0 %1085
  %v1087 = vsel %vm1018, %v1083, 0.0
  %1088 = vadd.xlane.f32.xlu0 %v1087
  %v1089 = vpop.xlane.xlu0 %1088
  %v1090 = vsel %vm1029, %v1086, %v1080
  %v1091 = vsel %vm1029, %v1089, %v1081
  %v1092 = vsel %vm1042, %v1069, 0.0
  %v1093 = vsel %vm1042, %v1071, 0.0
  %v1094 = vsel %vm1018, %v1092, 0.0
  %1095 = vadd.xlane.f32.xlu0 %v1094
  %v1096 = vpop.xlane.xlu0 %1095
  %v1097 = vsel %vm1018, %v1093, 0.0
  %1098 = vadd.xlane.f32.xlu0 %v1097
  %v1099 = vpop.xlane.xlu0 %1098
  %v1100 = vsel %vm1042, %v1096, %v1090
  %v1101 = vsel %vm1042, %v1099, %v1091
  %v1102 = vsel %vm1055, %v1069, 0.0
  %v1103 = vsel %vm1055, %v1071, 0.0
  %v1104 = vsel %vm1018, %v1102, 0.0
  %1105 = vadd.xlane.f32.xlu0 %v1104
  %v1106 = vpop.xlane.xlu0 %1105
  %v1107 = vsel %vm1018, %v1103, 0.0
  %1108 = vadd.xlane.f32.xlu0 %v1107
  %v1109 = vpop.xlane.xlu0 %1108
  %v1110 = vsel %vm1055, %v1106, %v1100
  %v1111 = vsel %vm1055, %v1109, %v1101
  %v1112 = vrcp.pop %v1110
  %v1113 = vrcp.pop %v1111
  %v1114 = vmul.f32 %v1069, %v1112
  %v1115 = vmul.f32 %v1071, %v1113
  %1116 = vst.msk [vmem:[%s7] sm:$0xff] %vm1018, %v1114
  %1117 = vst.msk [vmem:[%s7 + $0x8] sm:$0xff] %vm1018, %v1115
  // Predicated region
  $region30: #{actor_forward.1} parent=0 // pred_check
    _
  $region31: #{actor_forward.1} parent=0 // pred_check_branch
    %1119 = sbr.rel (0) target = $region33
  $region32: #{actor_forward.1} parent=0 // pred_region
    _
  $region33: #{actor_forward.1} parent=0 // pred_fallthru
    _
  // Predicated region
  $region34: #{actor_forward.1} parent=0 // pred_check
    _
  $region35: #{actor_forward.1} parent=0 // pred_check_branch
    %1121 = sbr.rel (0) target = $region37
  $region36: #{actor_forward.1} parent=0 // pred_region
    _
  $region37: #{actor_forward.1} parent=0 // pred_fallthru
    _

</llo_original>
